<compile_context>
chip_gen: v6e
topology: v6e:2x2x1
jax: 0.10.0
libtpu: 0.0.40
codegen_flags: <defaults>
</compile_context>

<pallas_src>
import functools

import jax
import jax.numpy as jnp
from jax.experimental import pallas as pl
from jax.experimental.pallas import tpu as pltpu

LANE = 128          # TPU lane width; feature dims are padded to a multiple of this
NEG_BIG = -9e15     # adjacency mask value (matches the PyTorch module)


def _round_up(x, m):
    return (x + m - 1) // m * m


# ----------------------------------------------------------------------------
# GAT math on lane-padded operands.  Shared by the Pallas kernel body
# (approx_recip=True) and the algorithm-matched JAX reference (False).
# ----------------------------------------------------------------------------
def _gat_math(feat, adj, w_b, a12_b, alpha, *, approx_recip):
    # feat: (N, Dp) f32, adj: (N, N) f32, w_b: (Dp, Hp) bf16, a12_b: (Hp, 2) bf16
    Wh = jnp.dot(feat.astype(jnp.bfloat16), w_b,
                 preferred_element_type=jnp.float32)                    # (N, Hp)
    Wh_b = Wh.astype(jnp.bfloat16)
    # Fused attention projection: one (N,Hp)@(Hp,2) matmul gives [Wh@a1 | Wh@a2].
    Wh12 = jnp.dot(Wh_b, a12_b, preferred_element_type=jnp.float32)     # (N, 2)
    e = Wh12[:, 0:1] + Wh12[:, 1:2].T          # (N, N); tiny (N,1)->(1,N) relayout
    e = jnp.where(e > 0, e, alpha * e)         # LeakyReLU(alpha)
    att = jnp.where(adj > 0, e, jnp.full_like(e, NEG_BIG))   # adjacency mask
    att = att - jnp.max(att, axis=1, keepdims=True)          # softmax(dim=1)
    p = jnp.exp(att)
    denom = jnp.sum(p, axis=1, keepdims=True)
    inv = pl.reciprocal(denom, approx=True) if approx_recip else 1.0 / denom
    att = p * inv
    # TODO(synk): F.dropout(attention, p=0.0) in eval mode is identity; not modeled.
    h = jnp.dot(att.astype(jnp.bfloat16), Wh_b,
                preferred_element_type=jnp.float32)                     # (N, Hp)
    # concat=True -> ELU.  exp(min(h,0)) avoids overflow; padded lanes (h==0)
    # take the h branch and stay exactly zero.
    return jnp.where(h > 0, h, jnp.exp(jnp.minimum(h, 0.0)) - 1.0)


# ----------------------------------------------------------------------------
# Pallas kernel: one graph per grid step, fully fused in VMEM.
# ----------------------------------------------------------------------------
def gat_kernel(feat_ref, adj_ref, w_ref, a12_ref, out_ref, *, alpha):
    # feat_ref: (1, N, Dp) f32   adj_ref: (1, N, N) f32
    # w_ref   : (Dp, Hp)   bf16  a12_ref: (Hp, 2)  bf16
    # out_ref : (1, N, Hp) f32   (lane-dense stores)
    out_ref[0] = _gat_math(feat_ref[0], adj_ref[0], w_ref[...], a12_ref[...],
                           alpha, approx_recip=True)


def _pad_inputs(feature, W, a1, a2):
    B, N, D = feature.shape
    H = W.shape[1]
    Dp = _round_up(max(D, LANE), LANE)
    Hp = _round_up(max(H, LANE), LANE)
    x = jnp.zeros((B, N, Dp), jnp.float32).at[:, :, :D].set(feature)
    w_b = jnp.zeros((Dp, Hp), jnp.float32).at[:D, :H].set(W).astype(jnp.bfloat16)
    a12_b = (jnp.zeros((Hp, 2), jnp.float32)
             .at[:H, 0:1].set(a1).at[:H, 1:2].set(a2)).astype(jnp.bfloat16)
    return x, w_b, a12_b, Dp, Hp


def gat_forward(feature, adj, W, a1, a2, alpha):
    """Batched GATLayer forward: feature (B,N,D), adj (B,N,N) -> (B,N,H)."""
    B, N, D = feature.shape
    H = W.shape[1]
    assert N % 8 == 0, "node count must be a multiple of the sublane width (8)"

    x, w_b, a12_b, Dp, Hp = _pad_inputs(feature, W, a1, a2)
    kernel = functools.partial(gat_kernel, alpha=alpha)

    flops = B * (2 * N * Dp * Hp        # feature @ W
                 + 2 * N * Hp * 2       # Wh @ [a1|a2]
                 + 2 * N * N * Hp)      # att @ Wh
    transcendentals = B * (N * N + N * Hp + N)   # softmax exp + ELU exp + recip
    bytes_accessed = ((x.size + adj.size + B * N * Hp) * 4
                      + (w_b.size + a12_b.size) * 2)

    out = pl.pallas_call(
        kernel,
        out_shape=jax.ShapeDtypeStruct((B, N, Hp), jnp.float32),
        grid_spec=pltpu.PrefetchScalarGridSpec(
            num_scalar_prefetch=0,
            grid=(B,),
            in_specs=[
                pl.BlockSpec((1, N, Dp), lambda b: (b, 0, 0)),
                pl.BlockSpec((1, N, N), lambda b: (b, 0, 0)),
                pl.BlockSpec((Dp, Hp), lambda b: (0, 0)),
                pl.BlockSpec((Hp, 2), lambda b: (0, 0)),
            ],
            out_specs=pl.BlockSpec((1, N, Hp), lambda b: (b, 0, 0)),
        ),
        compiler_params=pltpu.CompilerParams(
            dimension_semantics=("parallel",),   # graphs are independent
            vmem_limit_bytes=32 * 1024 * 1024,   # safe on v5e / v6e / v7x
        ),
        cost_estimate=pl.CostEstimate(flops=flops,
                                      transcendentals=transcendentals,
                                      bytes_accessed=bytes_accessed),
    )(x, adj, w_b, a12_b)
    return out[..., :H]


def gat_layer_forward(feature, adj, W, a1, a2, alpha):
    """Single-graph forward, matching the module signature (N,D),(N,N)->(N,H)."""
    return gat_forward(feature[None], adj[None], W, a1, a2, alpha)[0]


# ----------------------------------------------------------------------------
# Pure-JAX references for correctness checking.
# ----------------------------------------------------------------------------
def gat_ref_f32(feature, adj, W, a1, a2, alpha):
    """Original module math: f32 throughout."""
    Wh = feature @ W
    e = (Wh @ a1) + (Wh @ a2).T
    e = jnp.where(e > 0, e, alpha * e)
    att = jnp.where(adj > 0, e, jnp.full_like(e, NEG_BIG))
    att = jax.nn.softmax(att, axis=1)
    h = att @ Wh
    return jnp.where(h > 0, h, jnp.expm1(h))    # ELU (concat=True)


def gat_ref_bf16(feature, adj, W, a1, a2, alpha):
    """Same algorithm as the kernel (bf16 matmul operands, f32 accumulation),
    exact divide instead of the approximate reciprocal."""
    B = feature.shape[0]
    H = W.shape[1]
    x, w_b, a12_b, _, _ = _pad_inputs(feature, W, a1, a2)
    outs = [_gat_math(x[i], adj[i], w_b, a12_b, alpha, approx_recip=False)
            for i in range(B)]
    return jnp.stack(outs)[..., :H]


# ----------------------------------------------------------------------------
# Main
# ----------------------------------------------------------------------------
if __name__ == "__main__":
    key = jax.random.PRNGKey(0)
    B, N, D, H = 2, 64, 16, 16
    alpha = 0.2

    ks = jax.random.split(key, 4)
    feature = jax.random.uniform(ks[0], (B, N, D), jnp.float32, -1.0, 1.0)
    adj = (jax.random.uniform(ks[1], (B, N, N)) < 0.25).astype(jnp.float32)
    adj = jnp.maximum(adj, jnp.eye(N, dtype=jnp.float32)[None])   # self loops

    # Parameter init (xavier_uniform_, gain=1.414), deterministic.
    def xavier(k, shape, gain=1.414):
        fan_in, fan_out = shape
        bound = gain * (6.0 / (fan_in + fan_out)) ** 0.5
        return jax.random.uniform(k, shape, jnp.float32, -bound, bound)

    W = xavier(ks[2], (D, H))
    a = xavier(ks[3], (2 * H, 1))
    a1, a2 = a[:H], a[H:]

    out = gat_forward(feature, adj, W, a1, a2, alpha)
    out = jax.block_until_ready(out)
    assert out.shape == (B, N, H)

    # Single-graph path (exact module signature) agrees with the batched path.
    out0 = jax.block_until_ready(gat_layer_forward(feature[0], adj[0], W, a1, a2, alpha))
    assert jnp.allclose(out0, out[0], rtol=1e-5, atol=1e-5)

    # Tight check vs. the algorithm-matched (bf16-operand) reference: the only
    # deltas are the approximate reciprocal and MXU accumulation order.
    ref_b = gat_ref_bf16(feature, adj, W, a1, a2, alpha)
    assert jnp.allclose(out, ref_b, rtol=1e-2, atol=1e-2), \
        float(jnp.max(jnp.abs(out - ref_b)))

    # Loose semantic check vs. the exact-f32 original-module math (bounds the
    # bf16-operand rounding).
    ref_f = jax.vmap(lambda f, a_: gat_ref_f32(f, a_, W, a1, a2, alpha))(feature, adj)
    rel = jnp.linalg.norm(out - ref_f) / jnp.linalg.norm(ref_f)
    assert float(rel) < 0.1, float(rel)

    print("KERNEL_OK")
</pallas_src>

<mosaic_0001>
module attributes {stable_mosaic.version = 11 : i64} {
  func.func @gat_kernel(%arg0: i32, %arg1: memref<1x64x128xf32, #tpu.memory_space<vmem>>, %arg2: memref<1x64x64xf32, #tpu.memory_space<vmem>>, %arg3: memref<128x128xbf16, #tpu.memory_space<vmem>>, %arg4: memref<128x2xbf16, #tpu.memory_space<vmem>>, %arg5: memref<1x64x128xf32, #tpu.memory_space<vmem>>) attributes {dimension_semantics = [#tpu.dimension_semantics<parallel>], iteration_bounds = array<i64: 2>, scalar_prefetch = 0 : i64, scratch_operands = 0 : i64, tpu.core_type = #tpu.core_type<tc>, window_params = [{transform_indices = @transform_0, window_bounds = array<i64: 1, 64, 128>}, {transform_indices = @transform_1, window_bounds = array<i64: 1, 64, 64>}, {pipeline_mode = #tpu.pipeline_mode<synchronous>, transform_indices = @transform_2, window_bounds = array<i64: 128, 128>}, {pipeline_mode = #tpu.pipeline_mode<synchronous>, transform_indices = @transform_3, window_bounds = array<i64: 128, 2>}, {transform_indices = @transform_4, window_bounds = array<i64: 1, 64, 128>}]} {
    %c0 = arith.constant 0 : index
    %c0_0 = arith.constant 0 : index
    %c0_1 = arith.constant 0 : index
    %0 = vector.load %arg1[%c0, %c0_0, %c0_1] : memref<1x64x128xf32, #tpu.memory_space<vmem>>, vector<1x64x128xf32>
    %1 = vector.shape_cast %0 : vector<1x64x128xf32> to vector<64x128xf32>
    %c0_2 = arith.constant 0 : index
    %c0_3 = arith.constant 0 : index
    %c0_4 = arith.constant 0 : index
    %2 = vector.load %arg2[%c0_2, %c0_3, %c0_4] : memref<1x64x64xf32, #tpu.memory_space<vmem>>, vector<1x64x64xf32>
    %3 = vector.shape_cast %2 : vector<1x64x64xf32> to vector<64x64xf32>
    %c0_5 = arith.constant 0 : index
    %c0_6 = arith.constant 0 : index
    %4 = vector.load %arg3[%c0_5, %c0_6] : memref<128x128xbf16, #tpu.memory_space<vmem>>, vector<128x128xbf16>
    %c0_7 = arith.constant 0 : index
    %c0_8 = arith.constant 0 : index
    %5 = vector.load %arg4[%c0_7, %c0_8] : memref<128x2xbf16, #tpu.memory_space<vmem>>, vector<128x2xbf16>
    %6 = arith.truncf %1 : vector<64x128xf32> to vector<64x128xbf16>
    %cst = arith.constant dense<0.000000e+00> : vector<64x128xf32>
    %7 = tpu.matmul %6, %4, %cst {dimension_numbers = #tpu.dot_dimension_numbers<[1], [0], [0], [1], [0, 0, 1, 1], [], []>} : vector<64x128xbf16>, vector<128x128xbf16>, vector<64x128xf32> -> vector<64x128xf32>
    %8 = arith.truncf %7 : vector<64x128xf32> to vector<64x128xbf16>
    %cst_9 = arith.constant dense<0.000000e+00> : vector<64x2xf32>
    %9 = tpu.matmul %8, %5, %cst_9 {dimension_numbers = #tpu.dot_dimension_numbers<[1], [0], [0], [1], [0, 0, 1, 1], [], []>} : vector<64x128xbf16>, vector<128x2xbf16>, vector<64x2xf32> -> vector<64x2xf32>
    %10 = vector.extract_strided_slice %9 {offsets = [0, 0], sizes = [64, 1], strides = [1, 1]} : vector<64x2xf32> to vector<64x1xf32>
    %11 = vector.extract_strided_slice %9 {offsets = [0, 1], sizes = [64, 1], strides = [1, 1]} : vector<64x2xf32> to vector<64x1xf32>
    %12 = tpu.transpose %11, [1, 0] : vector<64x1xf32> -> vector<1x64xf32>
    %13 = vector.broadcast %10 : vector<64x1xf32> to vector<64x64xf32>
    %14 = vector.broadcast %12 : vector<1x64xf32> to vector<64x64xf32>
    %15 = arith.addf %13, %14 : vector<64x64xf32>
    %cst_10 = arith.constant 0.000000e+00 : f32
    %16 = vector.broadcast %cst_10 : f32 to vector<64x64xf32>
    %17 = arith.cmpf ogt, %15, %16 : vector<64x64xf32>
    %cst_11 = arith.constant 2.000000e-01 : f32
    %18 = vector.broadcast %cst_11 : f32 to vector<64x64xf32>
    %19 = arith.mulf %18, %15 : vector<64x64xf32>
    %20 = arith.select %17, %15, %19 : vector<64x64xi1>, vector<64x64xf32>
    %cst_12 = arith.constant 0.000000e+00 : f32
    %21 = vector.broadcast %cst_12 : f32 to vector<64x64xf32>
    %22 = arith.cmpf ogt, %3, %21 : vector<64x64xf32>
    %cst_13 = arith.constant -9.000000e+15 : f32
    %23 = vector.broadcast %cst_13 : f32 to vector<64x64xf32>
    %24 = arith.select %22, %20, %23 : vector<64x64xi1>, vector<64x64xf32>
    %cst_14 = arith.constant dense<0xFF800000> : vector<64xf32>
    %25 = vector.multi_reduction <maximumf>, %24, %cst_14 [1] : vector<64x64xf32> to vector<64xf32>
    %26 = vector.shape_cast %25 : vector<64xf32> to vector<64x1xf32>
    %27 = vector.broadcast %26 : vector<64x1xf32> to vector<64x64xf32>
    %28 = arith.subf %24, %27 : vector<64x64xf32>
    %29 = math.exp %28 : vector<64x64xf32>
    %cst_15 = arith.constant dense<0.000000e+00> : vector<64xf32>
    %30 = vector.multi_reduction <add>, %29, %cst_15 [1] : vector<64x64xf32> to vector<64xf32>
    %31 = vector.shape_cast %30 : vector<64xf32> to vector<64x1xf32>
    %32 = tpu.reciprocal %31 {approx = true} : vector<64x1xf32> -> vector<64x1xf32>
    %33 = vector.broadcast %32 : vector<64x1xf32> to vector<64x64xf32>
    %34 = arith.mulf %29, %33 : vector<64x64xf32>
    %35 = arith.truncf %34 : vector<64x64xf32> to vector<64x64xbf16>
    %cst_16 = arith.constant dense<0.000000e+00> : vector<64x128xf32>
    %36 = tpu.matmul %35, %8, %cst_16 {dimension_numbers = #tpu.dot_dimension_numbers<[1], [0], [0], [1], [0, 0, 1, 1], [], []>} : vector<64x64xbf16>, vector<64x128xbf16>, vector<64x128xf32> -> vector<64x128xf32>
    %cst_17 = arith.constant 0.000000e+00 : f32
    %37 = vector.broadcast %cst_17 : f32 to vector<64x128xf32>
    %38 = arith.cmpf ogt, %36, %37 : vector<64x128xf32>
    %cst_18 = arith.constant 0.000000e+00 : f32
    %39 = vector.broadcast %cst_18 : f32 to vector<64x128xf32>
    %40 = arith.minimumf %36, %39 : vector<64x128xf32>
    %41 = math.exp %40 : vector<64x128xf32>
    %cst_19 = arith.constant 1.000000e+00 : f32
    %42 = vector.broadcast %cst_19 : f32 to vector<64x128xf32>
    %43 = arith.subf %41, %42 : vector<64x128xf32>
    %44 = arith.select %38, %36, %43 : vector<64x128xi1>, vector<64x128xf32>
    %c0_20 = arith.constant 0 : index
    %c0_21 = arith.constant 0 : index
    %c0_22 = arith.constant 0 : index
    %45 = vector.load %arg5[%c0_20, %c0_21, %c0_22] : memref<1x64x128xf32, #tpu.memory_space<vmem>>, vector<1x64x128xf32>
    %46 = vector.shape_cast %45 : vector<1x64x128xf32> to vector<64x128xf32>
    %47 = vector.shape_cast %44 : vector<64x128xf32> to vector<1x64x128xf32>
    tpu.vector_store %arg5[%c0_20, %c0_21, %c0_22], %47 {strides = array<i32>} : memref<1x64x128xf32, #tpu.memory_space<vmem>>, vector<1x64x128xf32>,
    return
  }
  func.func @transform_0(%arg0: i32) -> (i32, i32, i32) {
    %c0_i32 = arith.constant 0 : i32
    %c0_i32_0 = arith.constant 0 : i32
    %c0_i32_1 = arith.constant 0 : i32
    return %arg0, %c0_i32, %c0_i32_0 : i32, i32, i32
  }
  func.func @transform_1(%arg0: i32) -> (i32, i32, i32) {
    %c0_i32 = arith.constant 0 : i32
    %c0_i32_0 = arith.constant 0 : i32
    %c0_i32_1 = arith.constant 0 : i32
    return %arg0, %c0_i32, %c0_i32_0 : i32, i32, i32
  }
  func.func @transform_2(%arg0: i32) -> (i32, i32) {
    %c0_i32 = arith.constant 0 : i32
    %c0_i32_0 = arith.constant 0 : i32
    %c0_i32_1 = arith.constant 0 : i32
    return %c0_i32, %c0_i32_0 : i32, i32
  }
  func.func @transform_3(%arg0: i32) -> (i32, i32) {
    %c0_i32 = arith.constant 0 : i32
    %c0_i32_0 = arith.constant 0 : i32
    %c0_i32_1 = arith.constant 0 : i32
    return %c0_i32, %c0_i32_0 : i32, i32
  }
  func.func @transform_4(%arg0: i32) -> (i32, i32, i32) {
    %c0_i32 = arith.constant 0 : i32
    %c0_i32_0 = arith.constant 0 : i32
    %c0_i32_1 = arith.constant 0 : i32
    return %arg0, %c0_i32, %c0_i32_0 : i32, i32, i32
  }
}

</mosaic_0001>

<llo_original>
// kernel: tpu_custom_call.1
$region0: #{tpu_custom_call.1}
  #allocation0 [shape = 'u32[]', space=smem, size = 0x4, offset = 0x4, fixed_abs, tag = 'smem constant byte address 0x4 - core index']
  #allocation1 [shape = 'u32[144,128]{1,0:T(1,128)}', space=vmem, size = 0x12000, scoped, tag = 'internal scratch']
  %s0 = inlined_call_operand.hbm [shape: f32[2,64,128], index: 0, kind: input, shape index: {}]
  %s1 = inlined_call_operand.hbm [shape: f32[2,64,64], index: 1, kind: input, shape index: {}]
  %s2 = inlined_call_operand.vmem [shape: bf16[128,128], index: 2, kind: input, shape index: {}]
  %s3 = inlined_call_operand.vmem [shape: bf16[128,2], index: 3, kind: input, shape index: {}]
  %s4 = inlined_call_operand.hbm [shape: f32[2,64,128], index: 4, kind: output, shape index: {}]
  %s5 = sld [smem:[#allocation0]]
  $region57: #{tpu_custom_call.1} parent=0
    _
  %s7 = ssub.s32 1, %s5
  %s8 = scalar_select 0, %s7, %s5
  $region1: #{tpu_custom_call.1} parent=0
    #allocation2 [shape = 'u8[65536]{0}', space=vmem, size = 0x10000, scoped, tag = 'input window, operand 0']
    #allocation3 [shape = 's32[2]{0}', space=sflag, size = 0x8, scoped, tag = 'scoped memory for tpu_custom_call.1']
    #allocation4 [shape = 's32[2]{0}', space=sflag, size = 0x8, scoped, tag = 'scoped memory for tpu_custom_call.1']
    #allocation5 [shape = 'u8[65536]{0}', space=vmem, size = 0x10000, scoped, tag = 'input window, operand 1']
    #allocation6 [shape = 's32[2]{0}', space=sflag, size = 0x8, scoped, tag = 'scoped memory for tpu_custom_call.1']
    #allocation7 [shape = 'u8[65536]{0}', space=vmem, size = 0x10000, scoped, tag = 'output window, operand 0']
    %9 = vsyncpa [#allocation3], 0
    %s10 = scalar_lea.sflag [#allocation3], 1
    %11 = vsyncpa %s10, 0
    %12 = vsyncpa [#allocation6], 0
    %s13 = scalar_lea.sflag [#allocation6], 1
    %14 = vsyncpa %s13, 0
    %15 = vsyncpa [#allocation4], 0
    %s16 = scalar_lea.sflag [#allocation4], 1
    %17 = vsyncpa %s16, 0
    loop: start=0, step=1, limit=4
    $region2: #{tpu_custom_call.1} parent=1 // loop_pre_header
      _
    $region3: #{tpu_custom_call.1} parent=1 // loop_header
      %s19 = sphi 0, %s23
      %p20 = scmp.ge.s32.totalorder %s19, 4
      %s29 = sphi 0, %s31
      %s32 = sphi 0, %s29
      %s33 = sphi 0, %s32
      %s49 = sphi 0, %s33
      %s55 = sphi 0, %s57
      %s58 = sphi 0, %s55
      %s59 = sphi 0, %s58
      %s75 = sphi 0, %s59
      %s79 = sphi 0, %s79
      %s81 = sphi 0, %s79
      %s82 = sphi 0, %s81
      %s96 = sphi 0, %s82
      %s100 = sphi 0, %s100
      %s102 = sphi 0, %s100
      %s103 = sphi 0, %s102
      %s117 = sphi 0, %s103
      %s123 = sphi 0, %s125
      %s126 = sphi 0, %s123
      %s127 = sphi 0, %s126
      %s143 = sphi 0, %s127
    $region4: #{tpu_custom_call.1} parent=1 // loop_header_branch
      %22 = sbr.rel (%p20) target = $region8
    $region5: #{tpu_custom_call.1} parent=1 // loop_body
      %s24 = ssub.s32 %s19, 1
      %s25 = ssub.s32 %s19, 2
      %s26 = sadd.s32 %s19, 1
      %s27 = ssub.s32 %s19, %s26
      %p28 = scmp.eq.s32.totalorder %s27, 0
      %s30 = sadd.s32 %s29, 1
      %s31 = scalar_select %p28, %s29, %s30
      %p34 = pneg %p28
      %p35 = scmp.eq.s32.totalorder %s19, 1
      %p36 = por %p34, %p35
      %p37 = scmp.ne.s32.totalorder %s29, %s32
      %p38 = scmp.eq.s32.totalorder %s19, 0
      %p39 = por %p37, %p38
      %p40 = scmp.ne.s32.totalorder %s29, %s32
      %p41 = scmp.eq.s32.totalorder %s24, 1
      %p42 = por %p40, %p41
      %p43 = scmp.ne.s32.totalorder %s32, %s33
      %p44 = scmp.eq.s32.totalorder %s24, 0
      %p45 = por %p43, %p44
      %p46 = scmp.ne.s32.totalorder %s32, %s33
      %p47 = scmp.eq.s32.totalorder %s25, 1
      %p48 = por %p46, %p47
      %p50 = scmp.ne.s32.totalorder %s33, %s49
      %p51 = scmp.eq.s32.totalorder %s25, 0
      %p52 = por %p50, %p51
      %s53 = ssub.s32 %s19, %s26
      %p54 = scmp.eq.s32.totalorder %s53, 0
      %s56 = sadd.s32 %s55, 1
      %s57 = scalar_select %p54, %s55, %s56
      %p60 = pneg %p54
      %p61 = scmp.eq.s32.totalorder %s19, 1
      %p62 = por %p60, %p61
      %p63 = scmp.ne.s32.totalorder %s55, %s58
      %p64 = scmp.eq.s32.totalorder %s19, 0
      %p65 = por %p63, %p64
      %p66 = scmp.ne.s32.totalorder %s55, %s58
      %p67 = scmp.eq.s32.totalorder %s24, 1
      %p68 = por %p66, %p67
      %p69 = scmp.ne.s32.totalorder %s58, %s59
      %p70 = scmp.eq.s32.totalorder %s24, 0
      %p71 = por %p69, %p70
      %p72 = scmp.ne.s32.totalorder %s58, %s59
      %p73 = scmp.eq.s32.totalorder %s25, 1
      %p74 = por %p72, %p73
      %p76 = scmp.ne.s32.totalorder %s59, %s75
      %p77 = scmp.eq.s32.totalorder %s25, 0
      %p78 = por %p76, %p77
      %s80 = sadd.s32 %s79, 1
      %p83 = scmp.eq.s32.totalorder %s19, 1
      %p84 = scmp.ne.s32.totalorder %s79, %s81
      %p85 = scmp.eq.s32.totalorder %s19, 0
      %p86 = por %p84, %p85
      %p87 = scmp.ne.s32.totalorder %s79, %s81
      %p88 = scmp.eq.s32.totalorder %s24, 1
      %p89 = por %p87, %p88
      %p90 = scmp.ne.s32.totalorder %s81, %s82
      %p91 = scmp.eq.s32.totalorder %s24, 0
      %p92 = por %p90, %p91
      %p93 = scmp.ne.s32.totalorder %s81, %s82
      %p94 = scmp.eq.s32.totalorder %s25, 1
      %p95 = por %p93, %p94
      %p97 = scmp.ne.s32.totalorder %s82, %s96
      %p98 = scmp.eq.s32.totalorder %s25, 0
      %p99 = por %p97, %p98
      %s101 = sadd.s32 %s100, 1
      %p104 = scmp.eq.s32.totalorder %s19, 1
      %p105 = scmp.ne.s32.totalorder %s100, %s102
      %p106 = scmp.eq.s32.totalorder %s19, 0
      %p107 = por %p105, %p106
      %p108 = scmp.ne.s32.totalorder %s100, %s102
      %p109 = scmp.eq.s32.totalorder %s24, 1
      %p110 = por %p108, %p109
      %p111 = scmp.ne.s32.totalorder %s102, %s103
      %p112 = scmp.eq.s32.totalorder %s24, 0
      %p113 = por %p111, %p112
      %p114 = scmp.ne.s32.totalorder %s102, %s103
      %p115 = scmp.eq.s32.totalorder %s25, 1
      %p116 = por %p114, %p115
      %p118 = scmp.ne.s32.totalorder %s103, %s117
      %p119 = scmp.eq.s32.totalorder %s25, 0
      %p120 = por %p118, %p119
      %s121 = ssub.s32 %s19, %s26
      %p122 = scmp.eq.s32.totalorder %s121, 0
      %s124 = sadd.s32 %s123, 1
      %s125 = scalar_select %p122, %s123, %s124
      %p128 = pneg %p122
      %p129 = scmp.eq.s32.totalorder %s19, 1
      %p130 = por %p128, %p129
      %p131 = scmp.ne.s32.totalorder %s123, %s126
      %p132 = scmp.eq.s32.totalorder %s19, 0
      %p133 = por %p131, %p132
      %p134 = scmp.ne.s32.totalorder %s123, %s126
      %p135 = scmp.eq.s32.totalorder %s24, 1
      %p136 = por %p134, %p135
      %p137 = scmp.ne.s32.totalorder %s126, %s127
      %p138 = scmp.eq.s32.totalorder %s24, 0
      %p139 = por %p137, %p138
      %p140 = scmp.ne.s32.totalorder %s126, %s127
      %p141 = scmp.eq.s32.totalorder %s25, 1
      %p142 = por %p140, %p141
      %p144 = scmp.ne.s32.totalorder %s127, %s143
      %p145 = scmp.eq.s32.totalorder %s25, 0
      %p146 = por %p144, %p145
      %p147 = scmp.le.s32.totalorder 1, %s19
      %p148 = scmp.lt.s32.totalorder %s19, 3
      %p149 = pnand %p147, %p148
      %p150 = pneg %p149
      // Predicated region
      $region9: #{tpu_custom_call.1} parent=5 // pred_check
        _
      $region10: #{tpu_custom_call.1} parent=5 // pred_check_branch
        %152 = sbr.rel (%p149) target = $region12
      $region11: #{tpu_custom_call.1} parent=5 // pred_region
        %s153 = ssub.s32 %s19, 1
        // Predicated region
        $region13: #{tpu_custom_call.1} parent=11 // pred_check
          %p154 = pneg %p92
        $region14: #{tpu_custom_call.1} parent=11 // pred_check_branch
          %156 = sbr.rel (%p154) target = $region16
        $region15: #{tpu_custom_call.1} parent=11 // pred_region
          _
        $region16: #{tpu_custom_call.1} parent=11 // pred_fallthru
          _
        // Predicated region
        $region17: #{tpu_custom_call.1} parent=11 // pred_check
          %p157 = pneg %p113
        $region18: #{tpu_custom_call.1} parent=11 // pred_check_branch
          %159 = sbr.rel (%p157) target = $region20
        $region19: #{tpu_custom_call.1} parent=11 // pred_region
          _
        $region20: #{tpu_custom_call.1} parent=11 // pred_fallthru
          _
      $region12: #{tpu_custom_call.1} parent=5 // pred_fallthru
        _
      %p160 = scmp.lt.s32.totalorder %s19, 2
      // Predicated region
      $region21: #{tpu_custom_call.1} parent=5 // pred_check
        %p161 = pneg %p160
      $region22: #{tpu_custom_call.1} parent=5 // pred_check_branch
        %163 = sbr.rel (%p161) target = $region24
      $region23: #{tpu_custom_call.1} parent=5 // pred_region
        // Predicated region
        $region25: #{tpu_custom_call.1} parent=23 // pred_check
          %p164 = pneg %p39
        $region26: #{tpu_custom_call.1} parent=23 // pred_check_branch
          %166 = sbr.rel (%p164) target = $region28
        $region27: #{tpu_custom_call.1} parent=23 // pred_region
          %s167 = sand.u32 %s29, 1
          %s168 = scalar_lea.sflag [#allocation3], %s167
          %s169 = sand.u32 %s29, 1
          %s170 = smul.addr %s169, 64
          %s171 = scalar_lea.vmem [#allocation2], %s170
          %s173 = ssub.s32 1024, 1024
          %174 = vsyncadd %s168, %s173
          %s175 = smul.addr %s19, 8
          %s176 = smul.addr %s175, 128
          %s177 = scalar_lea.hbm %s0, %s176
          %s178 = sshll.u32 %s171, 4
          %s179 = int_to_ptr.vmem [resolvable:$true] %s178
          %184 = dma.hbm_to_vmem [thread:$0]  %s177, 1024, %s179, %s168, 128, 128, 8
        $region28: #{tpu_custom_call.1} parent=23 // pred_fallthru
          _
        // Predicated region
        $region29: #{tpu_custom_call.1} parent=23 // pred_check
          %p185 = pneg %p65
        $region30: #{tpu_custom_call.1} parent=23 // pred_check_branch
          %187 = sbr.rel (%p185) target = $region32
        $region31: #{tpu_custom_call.1} parent=23 // pred_region
          %s188 = sand.u32 %s55, 1
          %s189 = scalar_lea.sflag [#allocation6], %s188
          %s190 = sand.u32 %s55, 1
          %s191 = smul.addr %s190, 64
          %s192 = scalar_lea.vmem [#allocation5], %s191
          %s194 = ssub.s32 1024, 1024
          %195 = vsyncadd %s189, %s194
          %s196 = smul.addr %s19, 8
          %s197 = smul.addr %s196, 128
          %s198 = scalar_lea.hbm %s1, %s197
          %s199 = sshll.u32 %s192, 4
          %s200 = int_to_ptr.vmem [resolvable:$true] %s199
          %205 = dma.hbm_to_vmem [thread:$0]  %s198, 1024, %s200, %s189, 128, 128, 8
        $region32: #{tpu_custom_call.1} parent=23 // pred_fallthru
          _
      $region24: #{tpu_custom_call.1} parent=5 // pred_fallthru
        _
      %p206 = scmp.le.s32.totalorder 1, %s19
      %p207 = scmp.lt.s32.totalorder %s19, 3
      %p208 = pnand %p206, %p207
      %p209 = pneg %p208
      // Predicated region
      $region33: #{tpu_custom_call.1} parent=5 // pred_check
        _
      $region34: #{tpu_custom_call.1} parent=5 // pred_check_branch
        %211 = sbr.rel (%p208) target = $region36
      $region35: #{tpu_custom_call.1} parent=5 // pred_region
        %s212 = ssub.s32 %s19, 1
        %s213 = sand.u32 %s32, 1
        %s214 = scalar_lea.sflag [#allocation3], %s213
        %s215 = sand.u32 %s32, 1
        %s216 = smul.addr %s215, 64
        %s217 = scalar_lea.vmem [#allocation2], %s216
        // Predicated region
        $region37: #{tpu_custom_call.1} parent=35 // pred_check
          %p218 = pneg %p45
        $region38: #{tpu_custom_call.1} parent=35 // pred_check_branch
          %220 = sbr.rel (%p218) target = $region40
        $region39: #{tpu_custom_call.1} parent=35 // pred_region
          %221 = dma.done %s214, 1024
        $region40: #{tpu_custom_call.1} parent=35 // pred_fallthru
          _
        %s222 = sand.u32 %s58, 1
        %s223 = scalar_lea.sflag [#allocation6], %s222
        %s224 = sand.u32 %s58, 1
        %s225 = smul.addr %s224, 64
        %s226 = scalar_lea.vmem [#allocation5], %s225
        // Predicated region
        $region41: #{tpu_custom_call.1} parent=35 // pred_check
          %p227 = pneg %p71
        $region42: #{tpu_custom_call.1} parent=35 // pred_check_branch
          %229 = sbr.rel (%p227) target = $region44
        $region43: #{tpu_custom_call.1} parent=35 // pred_region
          %230 = dma.done %s223, 1024
        $region44: #{tpu_custom_call.1} parent=35 // pred_fallthru
          _
        %s231 = sand.u32 %s32, 1
        %s232 = scalar_lea.sflag [#allocation3], %s231
        %s233 = sand.u32 %s32, 1
        %s234 = smul.addr %s233, 64
        %s235 = scalar_lea.vmem [#allocation2], %s234
        %p236 = pneg %p45
        %p237 = pneg %p42
        %s238 = sand.u32 %s58, 1
        %s239 = scalar_lea.sflag [#allocation6], %s238
        %s240 = sand.u32 %s58, 1
        %s241 = smul.addr %s240, 64
        %s242 = scalar_lea.vmem [#allocation5], %s241
        %p243 = pneg %p71
        %p244 = pneg %p68
        %p245 = pneg %p92
        %p246 = pneg %p89
        %p247 = pneg %p113
        %p248 = pneg %p110
        %p249 = pneg %p139
        %p250 = pneg %p136
        %s251 = sand.u32 %s126, 1
        %s252 = scalar_lea.sflag [#allocation4], %s251
        %s253 = sand.u32 %s126, 1
        %s254 = smul.addr %s253, 64
        %s255 = scalar_lea.vmem [#allocation7], %s254
        %v257 = vld [vmem:[%s217] sm:$0xff]
        %v258 = vld [vmem:[%s217 + $0x8] sm:$0xff]
        %v259 = vld [vmem:[%s217 + $0x10] sm:$0xff]
        %v260 = vld [vmem:[%s217 + $0x18] sm:$0xff]
        %v261 = vld [vmem:[%s217 + $0x20] sm:$0xff]
        %v262 = vld [vmem:[%s217 + $0x28] sm:$0xff]
        %v263 = vld [vmem:[%s217 + $0x30] sm:$0xff]
        %v264 = vld [vmem:[%s217 + $0x38] sm:$0xff]
        %v265 = vld [vmem:[%s226] sm:$0xff]
        %v266 = vld [vmem:[%s226 + $0x8] sm:$0xff]
        %v267 = vld [vmem:[%s226 + $0x10] sm:$0xff]
        %v268 = vld [vmem:[%s226 + $0x18] sm:$0xff]
        %v269 = vld [vmem:[%s226 + $0x20] sm:$0xff]
        %v270 = vld [vmem:[%s226 + $0x28] sm:$0xff]
        %v271 = vld [vmem:[%s226 + $0x30] sm:$0xff]
        %v272 = vld [vmem:[%s226 + $0x38] sm:$0xff]
        %v273 = vld [vmem:[%s2] sm:$0xf]
        %v274 = vld [vmem:[%s2 + $0x4] sm:$0xf]
        %v275 = vld [vmem:[%s2 + $0x8] sm:$0xf]
        %v276 = vld [vmem:[%s2 + $0xc] sm:$0xf]
        %v277 = vld [vmem:[%s2 + $0x10] sm:$0xf]
        %v278 = vld [vmem:[%s2 + $0x14] sm:$0xf]
        %v279 = vld [vmem:[%s2 + $0x18] sm:$0xf]
        %v280 = vld [vmem:[%s2 + $0x1c] sm:$0xf]
        %v281 = vld [vmem:[%s2 + $0x20] sm:$0xf]
        %v282 = vld [vmem:[%s2 + $0x24] sm:$0xf]
        %v283 = vld [vmem:[%s2 + $0x28] sm:$0xf]
        %v284 = vld [vmem:[%s2 + $0x2c] sm:$0xf]
        %v285 = vld [vmem:[%s2 + $0x30] sm:$0xf]
        %v286 = vld [vmem:[%s2 + $0x34] sm:$0xf]
        %v287 = vld [vmem:[%s2 + $0x38] sm:$0xf]
        %v288 = vld [vmem:[%s2 + $0x3c] sm:$0xf]
        %v289 = vld [vmem:[%s3] sm:$0xf]
        %v290 = vld [vmem:[%s3 + $0x4] sm:$0xf]
        %v291 = vld [vmem:[%s3 + $0x8] sm:$0xf]
        %v292 = vld [vmem:[%s3 + $0xc] sm:$0xf]
        %v293 = vld [vmem:[%s3 + $0x10] sm:$0xf]
        %v294 = vld [vmem:[%s3 + $0x14] sm:$0xf]
        %v295 = vld [vmem:[%s3 + $0x18] sm:$0xf]
        %v296 = vld [vmem:[%s3 + $0x1c] sm:$0xf]
        %v297 = vld [vmem:[%s3 + $0x20] sm:$0xf]
        %v298 = vld [vmem:[%s3 + $0x24] sm:$0xf]
        %v299 = vld [vmem:[%s3 + $0x28] sm:$0xf]
        %v300 = vld [vmem:[%s3 + $0x2c] sm:$0xf]
        %v301 = vld [vmem:[%s3 + $0x30] sm:$0xf]
        %v302 = vld [vmem:[%s3 + $0x34] sm:$0xf]
        %v303 = vld [vmem:[%s3 + $0x38] sm:$0xf]
        %v304 = vld [vmem:[%s3 + $0x3c] sm:$0xf]
        %v305 = vpack.c.bf16 %v258, %v257
        %v306 = vpack.c.bf16 %v260, %v259
        %v307 = vpack.c.bf16 %v262, %v261
        %v308 = vpack.c.bf16 %v264, %v263
        %v325 = vunpack.c.l.b16 %v273
        %v326 = vunpack.c.l.b16 %v274
        %v327 = vunpack.c.l.b16 %v275
        %v328 = vunpack.c.l.b16 %v276
        %v329 = vunpack.c.l.b16 %v277
        %v330 = vunpack.c.l.b16 %v278
        %v331 = vunpack.c.l.b16 %v279
        %v332 = vunpack.c.l.b16 %v280
        %v333 = vunpack.c.l.b16 %v281
        %v334 = vunpack.c.l.b16 %v282
        %v335 = vunpack.c.l.b16 %v283
        %v336 = vunpack.c.l.b16 %v284
        %v337 = vunpack.c.l.b16 %v285
        %v338 = vunpack.c.l.b16 %v286
        %v339 = vunpack.c.l.b16 %v287
        %v340 = vunpack.c.l.b16 %v288
        %v341 = vpack.c.b16 %v326, %v325
        %v342 = vpack.c.b16 %v328, %v327
        %v343 = vpack.c.b16 %v330, %v329
        %v344 = vpack.c.b16 %v332, %v331
        %v345 = vpack.c.b16 %v334, %v333
        %v346 = vpack.c.b16 %v336, %v335
        %v347 = vpack.c.b16 %v338, %v337
        %v348 = vpack.c.b16 %v340, %v339
        %357 = vmatprep.subr.bf16.mxu0 0
        %358 = vmatpush1.bf16.msra.mxu0 %v348
        %359 = vmatprep.subr.bf16.mxu0 0
        %360 = vmatpush1.bf16.msra.mxu0 %v347
        %361 = vmatprep.subr.bf16.mxu0 0
        %362 = vmatpush1.bf16.msra.mxu0 %v346
        %363 = vmatprep.subr.bf16.mxu0 0
        %364 = vmatpush1.bf16.msra.mxu0 %v345
        %365 = vmatprep.subr.bf16.mxu0 0
        %366 = vmatpush1.bf16.msra.mxu0 %v344
        %367 = vmatprep.subr.bf16.mxu0 0
        %368 = vmatpush1.bf16.msra.mxu0 %v343
        %369 = vmatprep.subr.bf16.mxu0 0
        %370 = vmatpush1.bf16.msra.mxu0 %v342
        %371 = vmatprep.subr.bf16.mxu0 0
        %372 = vmatpush1.bf16.msra.mxu0 %v341
        %373 = vmatprep.subr.bf16.mxu0 0
        %374 = vmatpush2.bf16.msra.mxu0 0
        %375 = vmatprep.subr.bf16.mxu0 0
        %376 = vmatpush2.bf16.msra.mxu0 0
        %377 = vmatprep.subr.bf16.mxu0 0
        %378 = vmatpush2.bf16.msra.mxu0 0
        %379 = vmatprep.subr.bf16.mxu0 0
        %380 = vmatpush2.bf16.msra.mxu0 0
        %381 = vmatprep.subr.bf16.mxu0 0
        %382 = vmatpush2.bf16.msra.mxu0 0
        %383 = vmatprep.subr.bf16.mxu0 0
        %384 = vmatpush2.bf16.msra.mxu0 0
        %385 = vmatprep.subr.bf16.mxu0 0
        %386 = vmatpush2.bf16.msra.mxu0 0
        %387 = vmatprep.subr.bf16.mxu0 0
        %388 = vmatpush2.bf16.msra.mxu0 0
        %389 = vmatprep.mubr.bf16.mxu0 0
        %390 = vmatmul.mubr.bf16.gmra.mxu0 %v305
        %v391 = vpop.f32.mrf.mxu0
        %v392 = vadd.f32 0.0, %v391
        %v393 = vpop.f32.mrf.mxu0
        %v394 = vpop.f32.mrf.mxu0
        %v395 = vadd.f32 0.0, %v394
        %v396 = vpop.f32.mrf.mxu0
        %397 = vmatprep.mubr.bf16.mxu0 0
        %398 = vmatmul.mubr.bf16.gmra.mxu0 %v306
        %v399 = vpop.f32.mrf.mxu0
        %v400 = vadd.f32 0.0, %v399
        %v401 = vpop.f32.mrf.mxu0
        %v402 = vpop.f32.mrf.mxu0
        %v403 = vadd.f32 0.0, %v402
        %v404 = vpop.f32.mrf.mxu0
        %405 = vmatprep.mubr.bf16.mxu0 0
        %406 = vmatmul.mubr.bf16.gmra.mxu0 %v307
        %v407 = vpop.f32.mrf.mxu0
        %v408 = vadd.f32 0.0, %v407
        %v409 = vpop.f32.mrf.mxu0
        %v410 = vpop.f32.mrf.mxu0
        %v411 = vadd.f32 0.0, %v410
        %v412 = vpop.f32.mrf.mxu0
        %413 = vmatprep.mubr.bf16.mxu0 0
        %414 = vmatmul.mubr.bf16.gmra.mxu0 %v308
        %v415 = vpop.f32.mrf.mxu0
        %v416 = vadd.f32 0.0, %v415
        %v417 = vpop.f32.mrf.mxu0
        %v418 = vpop.f32.mrf.mxu0
        %v419 = vadd.f32 0.0, %v418
        %v420 = vpop.f32.mrf.mxu0
        %421 = vdwg.mxu0
        %v422 = vpack.c.bf16 %v395, %v392
        %v423 = vpack.c.bf16 %v403, %v400
        %v424 = vpack.c.bf16 %v411, %v408
        %v425 = vpack.c.bf16 %v419, %v416
        %v442 = vunpack.c.l.b16 %v289
        %v443 = vunpack.c.l.b16 %v290
        %v444 = vunpack.c.l.b16 %v291
        %v445 = vunpack.c.l.b16 %v292
        %v446 = vunpack.c.l.b16 %v293
        %v447 = vunpack.c.l.b16 %v294
        %v448 = vunpack.c.l.b16 %v295
        %v449 = vunpack.c.l.b16 %v296
        %v450 = vunpack.c.l.b16 %v297
        %v451 = vunpack.c.l.b16 %v298
        %v452 = vunpack.c.l.b16 %v299
        %v453 = vunpack.c.l.b16 %v300
        %v454 = vunpack.c.l.b16 %v301
        %v455 = vunpack.c.l.b16 %v302
        %v456 = vunpack.c.l.b16 %v303
        %v457 = vunpack.c.l.b16 %v304
        %v458 = vpack.c.b16 %v443, %v442
        %v459 = vpack.c.b16 %v445, %v444
        %v460 = vpack.c.b16 %v447, %v446
        %v461 = vpack.c.b16 %v449, %v448
        %v462 = vpack.c.b16 %v451, %v450
        %v463 = vpack.c.b16 %v453, %v452
        %v464 = vpack.c.b16 %v455, %v454
        %v465 = vpack.c.b16 %v457, %v456
        %474 = vmatprep.subr.bf16.mxu0 0
        %475 = vmatpush1.bf16.msra.mxu0 %v465
        %476 = vmatprep.subr.bf16.mxu0 0
        %477 = vmatpush1.bf16.msra.mxu0 %v464
        %478 = vmatprep.subr.bf16.mxu0 0
        %479 = vmatpush1.bf16.msra.mxu0 %v463
        %480 = vmatprep.subr.bf16.mxu0 0
        %481 = vmatpush1.bf16.msra.mxu0 %v462
        %482 = vmatprep.subr.bf16.mxu0 0
        %483 = vmatpush1.bf16.msra.mxu0 %v461
        %484 = vmatprep.subr.bf16.mxu0 0
        %485 = vmatpush1.bf16.msra.mxu0 %v460
        %486 = vmatprep.subr.bf16.mxu0 0
        %487 = vmatpush1.bf16.msra.mxu0 %v459
        %488 = vmatprep.subr.bf16.mxu0 0
        %489 = vmatpush1.bf16.msra.mxu0 %v458
        %490 = vmatprep.subr.bf16.mxu0 0
        %491 = vmatpush2.bf16.msra.mxu0 0
        %492 = vmatprep.subr.bf16.mxu0 0
        %493 = vmatpush2.bf16.msra.mxu0 0
        %494 = vmatprep.subr.bf16.mxu0 0
        %495 = vmatpush2.bf16.msra.mxu0 0
        %496 = vmatprep.subr.bf16.mxu0 0
        %497 = vmatpush2.bf16.msra.mxu0 0
        %498 = vmatprep.subr.bf16.mxu0 0
        %499 = vmatpush2.bf16.msra.mxu0 0
        %500 = vmatprep.subr.bf16.mxu0 0
        %501 = vmatpush2.bf16.msra.mxu0 0
        %502 = vmatprep.subr.bf16.mxu0 0
        %503 = vmatpush2.bf16.msra.mxu0 0
        %504 = vmatprep.subr.bf16.mxu0 0
        %505 = vmatpush2.bf16.msra.mxu0 0
        %506 = vmatprep.mubr.bf16.mxu0 0
        %507 = vmatmul.mubr.bf16.gmra.mxu0 %v422
        %v508 = vpop.f32.mrf.mxu0
        %v509 = vadd.f32 0.0, %v508
        %v510 = vpop.f32.mrf.mxu0
        %v511 = vpop.f32.mrf.mxu0
        %v512 = vadd.f32 0.0, %v511
        %v513 = vpop.f32.mrf.mxu0
        %514 = vmatprep.mubr.bf16.mxu0 0
        %515 = vmatmul.mubr.bf16.gmra.mxu0 %v423
        %v516 = vpop.f32.mrf.mxu0
        %v517 = vadd.f32 0.0, %v516
        %v518 = vpop.f32.mrf.mxu0
        %v519 = vpop.f32.mrf.mxu0
        %v520 = vadd.f32 0.0, %v519
        %v521 = vpop.f32.mrf.mxu0
        %522 = vmatprep.mubr.bf16.mxu0 0
        %523 = vmatmul.mubr.bf16.gmra.mxu0 %v424
        %v524 = vpop.f32.mrf.mxu0
        %v525 = vadd.f32 0.0, %v524
        %v526 = vpop.f32.mrf.mxu0
        %v527 = vpop.f32.mrf.mxu0
        %v528 = vadd.f32 0.0, %v527
        %v529 = vpop.f32.mrf.mxu0
        %530 = vmatprep.mubr.bf16.mxu0 0
        %531 = vmatmul.mubr.bf16.gmra.mxu0 %v425
        %v532 = vpop.f32.mrf.mxu0
        %v533 = vadd.f32 0.0, %v532
        %v534 = vpop.f32.mrf.mxu0
        %v535 = vpop.f32.mrf.mxu0
        %v536 = vadd.f32 0.0, %v535
        %v537 = vpop.f32.mrf.mxu0
        %538 = vdwg.mxu0
        %547 = vrot.lane.b32.xlu0 %v509, 127
        %v548 = vpop.permute.xlu0 %547
        %549 = vrot.lane.b32.xlu0 %v512, 127
        %v550 = vpop.permute.xlu0 %549
        %551 = vrot.lane.b32.xlu0 %v517, 127
        %v552 = vpop.permute.xlu0 %551
        %553 = vrot.lane.b32.xlu0 %v520, 127
        %v554 = vpop.permute.xlu0 %553
        %555 = vrot.lane.b32.xlu0 %v525, 127
        %v556 = vpop.permute.xlu0 %555
        %557 = vrot.lane.b32.xlu0 %v528, 127
        %v558 = vpop.permute.xlu0 %557
        %559 = vrot.lane.b32.xlu0 %v533, 127
        %v560 = vpop.permute.xlu0 %559
        %561 = vrot.lane.b32.xlu0 %v536, 127
        %v562 = vpop.permute.xlu0 %561
        %571 = vxpose.xlu0.b32.start [1/16] %v548, 128
        %572 = vxpose.xlu0.b32.cont [2/16] %v550, 128
        %573 = vxpose.xlu0.b32.cont [3/16] %v552, 128
        %574 = vxpose.xlu0.b32.cont [4/16] %v554, 128
        %575 = vxpose.xlu0.b32.cont [5/16] %v556, 128
        %576 = vxpose.xlu0.b32.cont [6/16] %v558, 128
        %577 = vxpose.xlu0.b32.cont [7/16] %v560, 128
        %578 = vxpose.xlu0.b32.cont [8/16] %v562, 128
        %579 = vxpose.xlu0.b32.cont [9/16] 0.0, 128
        %580 = vxpose.xlu0.b32.cont [10/16] 0.0, 128
        %581 = vxpose.xlu0.b32.cont [11/16] 0.0, 128
        %582 = vxpose.xlu0.b32.cont [12/16] 0.0, 128
        %583 = vxpose.xlu0.b32.cont [13/16] 0.0, 128
        %584 = vxpose.xlu0.b32.cont [14/16] 0.0, 128
        %585 = vxpose.xlu0.b32.cont [15/16] 0.0, 128
        %586 = vxpose.xlu0.b32.end [16/16] 0.0, 128
        %v587 = vpop.trf.xlu0
        %v588 = vpop.trf.xlu0
        %v589 = vpop.trf.xlu0
        %v590 = vpop.trf.xlu0
        %v591 = vpop.trf.xlu0
        %v592 = vpop.trf.xlu0
        %v593 = vpop.trf.xlu0
        %v594 = vpop.trf.xlu0
        %v595 = vpop.trf.xlu0
        %v596 = vpop.trf.xlu0
        %v597 = vpop.trf.xlu0
        %v598 = vpop.trf.xlu0
        %v599 = vpop.trf.xlu0
        %v600 = vpop.trf.xlu0
        %v601 = vpop.trf.xlu0
        %v602 = vpop.trf.xlu0
        %603 = vset.pattern.permute.xlu0 0
        %604 = vperm.xlu0 %603, %v509
        %v605 = vpop.permute.xlu0 %604
        %607 = vset.pattern.permute.xlu0 0
        %608 = vperm.xlu0 %607, %v512
        %v609 = vpop.permute.xlu0 %608
        %611 = vset.pattern.permute.xlu0 0
        %612 = vperm.xlu0 %611, %v517
        %v613 = vpop.permute.xlu0 %612
        %615 = vset.pattern.permute.xlu0 0
        %616 = vperm.xlu0 %615, %v520
        %v617 = vpop.permute.xlu0 %616
        %619 = vset.pattern.permute.xlu0 0
        %620 = vperm.xlu0 %619, %v525
        %v621 = vpop.permute.xlu0 %620
        %623 = vset.pattern.permute.xlu0 0
        %624 = vperm.xlu0 %623, %v528
        %v625 = vpop.permute.xlu0 %624
        %627 = vset.pattern.permute.xlu0 0
        %628 = vperm.xlu0 %627, %v533
        %v629 = vpop.permute.xlu0 %628
        %631 = vset.pattern.permute.xlu0 0
        %632 = vperm.xlu0 %631, %v536
        %v633 = vpop.permute.xlu0 %632
        %v635 = vlaneseq
        %v636 = vshrl.u32 %v635, 7
        %v637 = vsub.s32 0, %v636
        %v638 = vrot.slane %v587, %v637
        %v639 = vadd.f32 %v605, %v638
        %v640 = vadd.f32 %v609, %v638
        %v641 = vadd.f32 %v613, %v638
        %v642 = vadd.f32 %v617, %v638
        %v643 = vadd.f32 %v621, %v638
        %v644 = vadd.f32 %v625, %v638
        %v645 = vadd.f32 %v629, %v638
        %v646 = vadd.f32 %v633, %v638
        %vm647 = vcmp.gt.f32.partialorder %v639, 0.0
        %vm648 = vcmp.gt.f32.partialorder %v640, 0.0
        %vm649 = vcmp.gt.f32.partialorder %v641, 0.0
        %vm650 = vcmp.gt.f32.partialorder %v642, 0.0
        %vm651 = vcmp.gt.f32.partialorder %v643, 0.0
        %vm652 = vcmp.gt.f32.partialorder %v644, 0.0
        %vm653 = vcmp.gt.f32.partialorder %v645, 0.0
        %vm654 = vcmp.gt.f32.partialorder %v646, 0.0
        %v655 = vmul.f32 %v639, 0.2
        %v656 = vmul.f32 %v640, 0.2
        %v657 = vmul.f32 %v641, 0.2
        %v658 = vmul.f32 %v642, 0.2
        %v659 = vmul.f32 %v643, 0.2
        %v660 = vmul.f32 %v644, 0.2
        %v661 = vmul.f32 %v645, 0.2
        %v662 = vmul.f32 %v646, 0.2
        %v663 = vsel %vm647, %v639, %v655
        %v664 = vsel %vm648, %v640, %v656
        %v665 = vsel %vm649, %v641, %v657
        %v666 = vsel %vm650, %v642, %v658
        %v667 = vsel %vm651, %v643, %v659
        %v668 = vsel %vm652, %v644, %v660
        %v669 = vsel %vm653, %v645, %v661
        %v670 = vsel %vm654, %v646, %v662
        %vm671 = vcmp.gt.f32.partialorder %v265, 0.0
        %vm672 = vcmp.gt.f32.partialorder %v266, 0.0
        %vm673 = vcmp.gt.f32.partialorder %v267, 0.0
        %vm674 = vcmp.gt.f32.partialorder %v268, 0.0
        %vm675 = vcmp.gt.f32.partialorder %v269, 0.0
        %vm676 = vcmp.gt.f32.partialorder %v270, 0.0
        %vm677 = vcmp.gt.f32.partialorder %v271, 0.0
        %vm678 = vcmp.gt.f32.partialorder %v272, 0.0
        %v679 = vsel %vm671, %v663, -9e+15
        %v680 = vsel %vm672, %v664, -9e+15
        %v681 = vsel %vm673, %v665, -9e+15
        %v682 = vsel %vm674, %v666, -9e+15
        %v683 = vsel %vm675, %v667, -9e+15
        %v684 = vsel %vm676, %v668, -9e+15
        %v685 = vsel %vm677, %v669, -9e+15
        %v686 = vsel %vm678, %v670, -9e+15
        %vm687 = vcmask 523264
        %v688 = vsel %vm687, %v679, -inf
        %689 = vmax.xlane.f32.xlu0 %v688
        %v690 = vpop.xlane.xlu0 %689
        %v691 = vsel %vm687, %v680, -inf
        %692 = vmax.xlane.f32.xlu0 %v691
        %v693 = vpop.xlane.xlu0 %692
        %v694 = vsel %vm687, %v681, -inf
        %695 = vmax.xlane.f32.xlu0 %v694
        %v696 = vpop.xlane.xlu0 %695
        %v697 = vsel %vm687, %v682, -inf
        %698 = vmax.xlane.f32.xlu0 %v697
        %v699 = vpop.xlane.xlu0 %698
        %v700 = vsel %vm687, %v683, -inf
        %701 = vmax.xlane.f32.xlu0 %v700
        %v702 = vpop.xlane.xlu0 %701
        %v703 = vsel %vm687, %v684, -inf
        %704 = vmax.xlane.f32.xlu0 %v703
        %v705 = vpop.xlane.xlu0 %704
        %v706 = vsel %vm687, %v685, -inf
        %707 = vmax.xlane.f32.xlu0 %v706
        %v708 = vpop.xlane.xlu0 %707
        %v709 = vsel %vm687, %v686, -inf
        %710 = vmax.xlane.f32.xlu0 %v709
        %v711 = vpop.xlane.xlu0 %710
        %v712 = vsub.f32 %v679, %v690
        %v713 = vsub.f32 %v680, %v693
        %v714 = vsub.f32 %v681, %v696
        %v715 = vsub.f32 %v682, %v699
        %v716 = vsub.f32 %v683, %v702
        %v717 = vsub.f32 %v684, %v705
        %v718 = vsub.f32 %v685, %v708
        %v719 = vsub.f32 %v686, %v711
        %v720 = vmul.f32 %v712, 1.442695
        %v721 = vpow.pop %v720
        %v722 = vmul.f32 %v713, 1.442695
        %v723 = vpow.pop %v722
        %v724 = vmul.f32 %v714, 1.442695
        %v725 = vpow.pop %v724
        %v726 = vmul.f32 %v715, 1.442695
        %v727 = vpow.pop %v726
        %v728 = vmul.f32 %v716, 1.442695
        %v729 = vpow.pop %v728
        %v730 = vmul.f32 %v717, 1.442695
        %v731 = vpow.pop %v730
        %v732 = vmul.f32 %v718, 1.442695
        %v733 = vpow.pop %v732
        %v734 = vmul.f32 %v719, 1.442695
        %v735 = vpow.pop %v734
        %v736 = vsel %vm687, %v721, 0.0
        %737 = vadd.xlane.f32.xlu0 %v736
        %v738 = vpop.xlane.xlu0 %737
        %v739 = vsel %vm687, %v723, 0.0
        %740 = vadd.xlane.f32.xlu0 %v739
        %v741 = vpop.xlane.xlu0 %740
        %v742 = vsel %vm687, %v725, 0.0
        %743 = vadd.xlane.f32.xlu0 %v742
        %v744 = vpop.xlane.xlu0 %743
        %v745 = vsel %vm687, %v727, 0.0
        %746 = vadd.xlane.f32.xlu0 %v745
        %v747 = vpop.xlane.xlu0 %746
        %v748 = vsel %vm687, %v729, 0.0
        %749 = vadd.xlane.f32.xlu0 %v748
        %v750 = vpop.xlane.xlu0 %749
        %v751 = vsel %vm687, %v731, 0.0
        %752 = vadd.xlane.f32.xlu0 %v751
        %v753 = vpop.xlane.xlu0 %752
        %v754 = vsel %vm687, %v733, 0.0
        %755 = vadd.xlane.f32.xlu0 %v754
        %v756 = vpop.xlane.xlu0 %755
        %v757 = vsel %vm687, %v735, 0.0
        %758 = vadd.xlane.f32.xlu0 %v757
        %v759 = vpop.xlane.xlu0 %758
        %v760 = vrcp.pop %v738
        %v761 = vrcp.pop %v741
        %v762 = vrcp.pop %v744
        %v763 = vrcp.pop %v747
        %v764 = vrcp.pop %v750
        %v765 = vrcp.pop %v753
        %v766 = vrcp.pop %v756
        %v767 = vrcp.pop %v759
        %v768 = vmul.f32 %v721, %v760
        %v769 = vmul.f32 %v723, %v761
        %v770 = vmul.f32 %v725, %v762
        %v771 = vmul.f32 %v727, %v763
        %v772 = vmul.f32 %v729, %v764
        %v773 = vmul.f32 %v731, %v765
        %v774 = vmul.f32 %v733, %v766
        %v775 = vmul.f32 %v735, %v767
        %v776 = vpack.c.bf16 %v769, %v768
        %v777 = vpack.c.bf16 %v771, %v770
        %v778 = vpack.c.bf16 %v773, %v772
        %v779 = vpack.c.bf16 %v775, %v774
        %v781 = vsel %vm687, %v776, 0
        %v784 = vsel %vm687, %v777, 0
        %v787 = vsel %vm687, %v778, 0
        %v790 = vsel %vm687, %v779, 0
        %792 = vmatprep.subr.bf16.mxu0 0
        %793 = vmatpush1.bf16.msra.mxu0 0
        %794 = vmatprep.subr.bf16.mxu0 0
        %795 = vmatpush1.bf16.msra.mxu0 0
        %796 = vmatprep.subr.bf16.mxu0 0
        %797 = vmatpush1.bf16.msra.mxu0 0
        %798 = vmatprep.subr.bf16.mxu0 0
        %799 = vmatpush1.bf16.msra.mxu0 0
        %800 = vmatprep.subr.bf16.mxu0 0
        %801 = vmatpush1.bf16.msra.mxu0 %v425
        %802 = vmatprep.subr.bf16.mxu0 0
        %803 = vmatpush1.bf16.msra.mxu0 %v424
        %804 = vmatprep.subr.bf16.mxu0 0
        %805 = vmatpush1.bf16.msra.mxu0 %v423
        %806 = vmatprep.subr.bf16.mxu0 0
        %807 = vmatpush1.bf16.msra.mxu0 %v422
        %808 = vmatprep.subr.bf16.mxu0 0
        %809 = vmatpush2.bf16.msra.mxu0 0
        %810 = vmatprep.subr.bf16.mxu0 0
        %811 = vmatpush2.bf16.msra.mxu0 0
        %812 = vmatprep.subr.bf16.mxu0 0
        %813 = vmatpush2.bf16.msra.mxu0 0
        %814 = vmatprep.subr.bf16.mxu0 0
        %815 = vmatpush2.bf16.msra.mxu0 0
        %816 = vmatprep.subr.bf16.mxu0 0
        %817 = vmatpush2.bf16.msra.mxu0 0
        %818 = vmatprep.subr.bf16.mxu0 0
        %819 = vmatpush2.bf16.msra.mxu0 0
        %820 = vmatprep.subr.bf16.mxu0 0
        %821 = vmatpush2.bf16.msra.mxu0 0
        %822 = vmatprep.subr.bf16.mxu0 0
        %823 = vmatpush2.bf16.msra.mxu0 0
        %824 = vmatprep.mubr.bf16.mxu0 0
        %825 = vmatmul.mubr.bf16.gmra.mxu0 %v781
        %v826 = vpop.f32.mrf.mxu0
        %v827 = vadd.f32 0.0, %v826
        %v828 = vpop.f32.mrf.mxu0
        %v829 = vpop.f32.mrf.mxu0
        %v830 = vadd.f32 0.0, %v829
        %v831 = vpop.f32.mrf.mxu0
        %832 = vmatprep.mubr.bf16.mxu0 0
        %833 = vmatmul.mubr.bf16.gmra.mxu0 %v784
        %v834 = vpop.f32.mrf.mxu0
        %v835 = vadd.f32 0.0, %v834
        %v836 = vpop.f32.mrf.mxu0
        %v837 = vpop.f32.mrf.mxu0
        %v838 = vadd.f32 0.0, %v837
        %v839 = vpop.f32.mrf.mxu0
        %840 = vmatprep.mubr.bf16.mxu0 0
        %841 = vmatmul.mubr.bf16.gmra.mxu0 %v787
        %v842 = vpop.f32.mrf.mxu0
        %v843 = vadd.f32 0.0, %v842
        %v844 = vpop.f32.mrf.mxu0
        %v845 = vpop.f32.mrf.mxu0
        %v846 = vadd.f32 0.0, %v845
        %v847 = vpop.f32.mrf.mxu0
        %848 = vmatprep.mubr.bf16.mxu0 0
        %849 = vmatmul.mubr.bf16.gmra.mxu0 %v790
        %v850 = vpop.f32.mrf.mxu0
        %v851 = vadd.f32 0.0, %v850
        %v852 = vpop.f32.mrf.mxu0
        %v853 = vpop.f32.mrf.mxu0
        %v854 = vadd.f32 0.0, %v853
        %v855 = vpop.f32.mrf.mxu0
        %856 = vdwg.mxu0
        %vm857 = vcmp.gt.f32.partialorder %v827, 0.0
        %vm858 = vcmp.gt.f32.partialorder %v830, 0.0
        %vm859 = vcmp.gt.f32.partialorder %v835, 0.0
        %vm860 = vcmp.gt.f32.partialorder %v838, 0.0
        %vm861 = vcmp.gt.f32.partialorder %v843, 0.0
        %vm862 = vcmp.gt.f32.partialorder %v846, 0.0
        %vm863 = vcmp.gt.f32.partialorder %v851, 0.0
        %vm864 = vcmp.gt.f32.partialorder %v854, 0.0
        %v865 = vmin.f32 %v827, 0.0
        %v866 = vmin.f32 %v830, 0.0
        %v867 = vmin.f32 %v835, 0.0
        %v868 = vmin.f32 %v838, 0.0
        %v869 = vmin.f32 %v843, 0.0
        %v870 = vmin.f32 %v846, 0.0
        %v871 = vmin.f32 %v851, 0.0
        %v872 = vmin.f32 %v854, 0.0
        %v873 = vmul.f32 %v865, 1.442695
        %v874 = vpow.pop %v873
        %v875 = vmul.f32 %v866, 1.442695
        %v876 = vpow.pop %v875
        %v877 = vmul.f32 %v867, 1.442695
        %v878 = vpow.pop %v877
        %v879 = vmul.f32 %v868, 1.442695
        %v880 = vpow.pop %v879
        %v881 = vmul.f32 %v869, 1.442695
        %v882 = vpow.pop %v881
        %v883 = vmul.f32 %v870, 1.442695
        %v884 = vpow.pop %v883
        %v885 = vmul.f32 %v871, 1.442695
        %v886 = vpow.pop %v885
        %v887 = vmul.f32 %v872, 1.442695
        %v888 = vpow.pop %v887
        %v889 = vsub.f32 %v874, 1.0
        %v890 = vsub.f32 %v876, 1.0
        %v891 = vsub.f32 %v878, 1.0
        %v892 = vsub.f32 %v880, 1.0
        %v893 = vsub.f32 %v882, 1.0
        %v894 = vsub.f32 %v884, 1.0
        %v895 = vsub.f32 %v886, 1.0
        %v896 = vsub.f32 %v888, 1.0
        %v897 = vsel %vm857, %v827, %v889
        %v898 = vsel %vm858, %v830, %v890
        %v899 = vsel %vm859, %v835, %v891
        %v900 = vsel %vm860, %v838, %v892
        %v901 = vsel %vm861, %v843, %v893
        %v902 = vsel %vm862, %v846, %v894
        %v903 = vsel %vm863, %v851, %v895
        %v904 = vsel %vm864, %v854, %v896
        %905 = vst [vmem:[%s255] sm:$0xff] %v897
        %906 = vst [vmem:[%s255 + $0x8] sm:$0xff] %v898
        %907 = vst [vmem:[%s255 + $0x10] sm:$0xff] %v899
        %908 = vst [vmem:[%s255 + $0x18] sm:$0xff] %v900
        %909 = vst [vmem:[%s255 + $0x20] sm:$0xff] %v901
        %910 = vst [vmem:[%s255 + $0x28] sm:$0xff] %v902
        %911 = vst [vmem:[%s255 + $0x30] sm:$0xff] %v903
        %912 = vst [vmem:[%s255 + $0x38] sm:$0xff] %v904
        %s913 = sand.u32 %s126, 1
        %s914 = scalar_lea.sflag [#allocation4], %s913
        %s915 = sand.u32 %s126, 1
        %s916 = smul.addr %s915, 64
        %s917 = scalar_lea.vmem [#allocation7], %s916
        // Predicated region
        $region45: #{tpu_custom_call.1} parent=35 // pred_check
          %p918 = pneg %p136
        $region46: #{tpu_custom_call.1} parent=35 // pred_check_branch
          %920 = sbr.rel (%p918) target = $region48
        $region47: #{tpu_custom_call.1} parent=35 // pred_region
          %s922 = ssub.s32 1024, 1024
          %923 = vsyncadd %s914, %s922
          %s924 = smul.addr %s24, 8
          %s925 = smul.addr %s924, 128
          %s926 = scalar_lea.hbm %s4, %s925
          %s927 = sshll.u32 %s917, 4
          %s928 = int_to_ptr.vmem [resolvable:$true] %s927
          %933 = dma.vmem_to_hbm [thread:$0]  %s928, 1024, %s926, %s914, 128, 128, 8
        $region48: #{tpu_custom_call.1} parent=35 // pred_fallthru
          _
      $region36: #{tpu_custom_call.1} parent=5 // pred_fallthru
        _
      %p934 = scmp.le.s32.totalorder 2, %s19
      // Predicated region
      $region49: #{tpu_custom_call.1} parent=5 // pred_check
        %p935 = pneg %p934
      $region50: #{tpu_custom_call.1} parent=5 // pred_check_branch
        %937 = sbr.rel (%p935) target = $region52
      $region51: #{tpu_custom_call.1} parent=5 // pred_region
        %s938 = ssub.s32 %s19, 2
        // Predicated region
        $region53: #{tpu_custom_call.1} parent=51 // pred_check
          %p939 = pneg %p142
        $region54: #{tpu_custom_call.1} parent=51 // pred_check_branch
          %941 = sbr.rel (%p939) target = $region56
        $region55: #{tpu_custom_call.1} parent=51 // pred_region
          %s942 = sand.u32 %s127, 1
          %s943 = scalar_lea.sflag [#allocation4], %s942
          %s944 = sand.u32 %s127, 1
          %s945 = smul.addr %s944, 64
          %s946 = scalar_lea.vmem [#allocation7], %s945
          %947 = dma.done %s943, 1024
        $region56: #{tpu_custom_call.1} parent=51 // pred_fallthru
          _
      $region52: #{tpu_custom_call.1} parent=5 // pred_fallthru
        _
    $region6: #{tpu_custom_call.1} parent=1 // loop_footer
      %s23 = sadd.s32 1, %s19
    $region7: #{tpu_custom_call.1} parent=1 // loop_footer_branch
      %18 = sbr.rel target = $region3
    $region8: #{tpu_custom_call.1} parent=1 // loop_exit
      _
    %948 = vsyncpa [#allocation3], 1
    %s949 = scalar_lea.sflag [#allocation3], 1
    %950 = vsyncpa %s949, 1
    %951 = vsyncpa [#allocation6], 1
    %s952 = scalar_lea.sflag [#allocation6], 1
    %953 = vsyncpa %s952, 1
    %954 = vsyncpa [#allocation4], 1
    %s955 = scalar_lea.sflag [#allocation4], 1
    %956 = vsyncpa %s955, 1

</llo_original>
